<compile_context>
chip_gen: v7x
topology: tpu7x:2x2x1
jax: 0.10.0
libtpu: 0.0.40
codegen_flags: <defaults>
</compile_context>

<pallas_src>
import functools

import numpy as np

import jax
import jax.numpy as jnp
from jax.experimental import pallas as pl
from jax.experimental.pallas import tpu as pltpu


def _round_up(x, m):
    return (x + m - 1) // m * m


def _pick_n_tile(e, k, w_itemsize, resident_budget=12 << 20):
    """Full E if the (K, E) weight comfortably fits VMEM, else a lane tile."""
    if k * e * w_itemsize <= resident_budget:
        return e
    for c in (512, 256, 128):
        if e >= c and e % c == 0:
            return c
    return e


def _patch_embed_kernel(p_ref, w_ref, b_ref, o_ref):
    # p_ref: (TM, K)  patch tile (streamed over M)
    # w_ref: (K, TN)  projection weight tile (VMEM-resident across the M sweep)
    # b_ref: (1, TN)  f32 bias tile (constant across M)
    # o_ref: (TM, TN) output tile
    acc = jnp.dot(p_ref[...], w_ref[...], preferred_element_type=jnp.float32)
    o_ref[...] = (acc + b_ref[...]).astype(o_ref.dtype)


@functools.partial(jax.jit, static_argnums=(3, 4))
def patch_embed(x, weight, bias, patch_size, compute_dtype=jnp.bfloat16):
    """x: (B, C, H, W) NCHW; weight: (E, C, ph, pw); bias: (E,).

    compute_dtype: operand dtype for the matmul (bf16 by default — f32
    accumulation is kept via preferred_element_type). Pass None to keep the
    input dtype (bit-exact-in-spirit vs the PyTorch f32 conv).
    """
    B, C, H, W = x.shape
    E = weight.shape[0]
    ph, pw = patch_size
    assert H % ph == 0 and W % pw == 0
    gh, gw = H // ph, W // pw
    num_patches = gh * gw
    K = C * ph * pw          # contraction dim (patch_dim)
    M = B * num_patches      # batch folded into matmul M

    out_dtype = x.dtype
    op_dtype = compute_dtype if compute_dtype is not None else x.dtype

    # --- patch extraction (XLA glue), cast first so it moves bf16 bytes -----
    # TODO(synk): fuse this im2col into the kernel (6-D BlockSpec on the free
    # (B,C,gh,ph,gw,pw) view + in-kernel relayout, or memory_space=pl.ANY with
    # manual DMA) to remove one extra HBM read+write of the patch tensor.
    xc = x.astype(op_dtype)
    p = xc.reshape(B, C, gh, ph, gw, pw)
    p = jnp.transpose(p, (0, 2, 4, 1, 3, 5)).reshape(M, K)

    # Conv weight (E, C, ph, pw) -> matmul weight (K, E); bias -> f32 (1, E).
    w_mat = weight.reshape(E, K).T.astype(op_dtype)
    b_mat = bias.astype(jnp.float32).reshape(1, E)

    p_itemsize = np.dtype(op_dtype).itemsize
    w_itemsize = p_itemsize
    o_itemsize = np.dtype(out_dtype).itemsize

    # --- tile selection ------------------------------------------------------
    TN = _pick_n_tile(E, K, w_itemsize)            # usually the full E (resident)
    granule = 8 * max(1, 4 // p_itemsize)          # sublane packing: 8/16/32

    def footprint(tm):
        # double-buffered patch/output tiles + (double-allocated) weight + bias
        return (2 * (tm * K * p_itemsize + tm * TN * o_itemsize
                     + K * TN * w_itemsize) + 8 * TN * 4)

    budget = 24 << 20                               # comfortably inside v7x 64 MiB
    TM = 8
    for cand in (1024, 512, 256, 128, 64, 32, 16, 8):
        if footprint(cand) <= budget:
            TM = cand
            break
    TM = min(TM, _round_up(M, granule))             # don't overshoot tiny M

    grid_m = pl.cdiv(M, TM)                         # ragged last block is masked
    grid_n = pl.cdiv(E, TN)                         # usually 1

    vmem_limit = min(max(32 << 20, int(1.5 * footprint(TM)) + (4 << 20)), 48 << 20)

    out = pl.pallas_call(
        _patch_embed_kernel,
        out_shape=jax.ShapeDtypeStruct((M, E), out_dtype),
        grid_spec=pltpu.PrefetchScalarGridSpec(
            num_scalar_prefetch=0,
            # N (weight column) axis is OUTER so the (K, TN) weight block index
            # is constant across the whole inner M sweep -> loaded once and
            # kept VMEM-resident (grid_n is 1 for typical ViT sizes anyway).
            grid=(grid_n, grid_m),
            in_specs=[
                pl.BlockSpec((TM, K), lambda j, i: (i, 0)),   # patches (streamed)
                pl.BlockSpec((K, TN), lambda j, i: (0, j)),   # weight (resident)
                pl.BlockSpec((1, TN), lambda j, i: (0, j)),   # bias (fetched once)
            ],
            out_specs=pl.BlockSpec((TM, TN), lambda j, i: (i, j)),
        ),
        compiler_params=pltpu.CompilerParams(
            dimension_semantics=("parallel", "parallel"),
            vmem_limit_bytes=vmem_limit,
        ),
    )(p, w_mat, b_mat)

    return out.reshape(B, num_patches, E)


def reference_patch_embed(x, weight, bias, patch_size):
    """Pure-JAX reference mirroring PyTorch Conv2d(stride=kernel) semantics."""
    y = jax.lax.conv_general_dilated(
        x, weight,
        window_strides=patch_size,
        padding="VALID",
        dimension_numbers=("NCHW", "OIHW", "NCHW"),
    ) + bias.reshape(1, -1, 1, 1)
    B, E, gh, gw = y.shape
    return jnp.transpose(y.reshape(B, E, gh * gw), (0, 2, 1))


if __name__ == "__main__":
    key = jax.random.PRNGKey(0)

    # Case 1: small module-consistent shapes, default bf16 operands.
    B, C, H, W = 2, 4, 16, 16
    patch_size = (4, 4)
    embed_dim = 32
    k1, k2, k3, key = jax.random.split(key, 4)
    x = jax.random.normal(k1, (B, C, H, W), dtype=jnp.float32)
    weight = jax.random.normal(k2, (embed_dim, C, *patch_size), dtype=jnp.float32) * 0.02
    bias = jax.random.normal(k3, (embed_dim,), dtype=jnp.float32) * 0.02

    out = jax.block_until_ready(patch_embed(x, weight, bias, patch_size))
    ref = reference_patch_embed(x, weight, bias, patch_size)
    assert out.shape == (B, (H // patch_size[0]) * (W // patch_size[1]), embed_dim)
    assert jnp.allclose(out, ref, atol=2e-2, rtol=2e-2), (
        float(jnp.max(jnp.abs(out - ref))))

    # Case 2: f32 operands (tight tolerance) + non-divisible M (ragged block).
    B2, C2, H2, W2, E2 = 3, 3, 20, 20, 48          # M = 3 * 25 = 75 (not /8)
    k1, k2, k3, key = jax.random.split(key, 4)
    x2 = jax.random.normal(k1, (B2, C2, H2, W2), dtype=jnp.float32)
    w2 = jax.random.normal(k2, (E2, C2, 4, 4), dtype=jnp.float32) * 0.02
    b2 = jax.random.normal(k3, (E2,), dtype=jnp.float32) * 0.02
    out2 = jax.block_until_ready(patch_embed(x2, w2, b2, (4, 4), None))
    ref2 = reference_patch_embed(x2, w2, b2, (4, 4))
    assert out2.shape == (B2, 25, E2)
    assert jnp.allclose(out2, ref2, atol=1e-4, rtol=1e-4), (
        float(jnp.max(jnp.abs(out2 - ref2))))

    print("KERNEL_OK")
</pallas_src>

<mosaic_0001>
module attributes {stable_mosaic.version = 11 : i64} {
  func.func @_patch_embed_kernel(%arg0: i32, %arg1: i32, %arg2: memref<32x64xbf16, #tpu.memory_space<vmem>>, %arg3: memref<64x32xbf16, #tpu.memory_space<vmem>>, %arg4: memref<1x32xf32, #tpu.memory_space<vmem>>, %arg5: memref<32x32xf32, #tpu.memory_space<vmem>>) attributes {dimension_semantics = [#tpu.dimension_semantics<parallel>, #tpu.dimension_semantics<parallel>], iteration_bounds = array<i64: 1, 1>, scalar_prefetch = 0 : i64, scratch_operands = 0 : i64, tpu.core_type = #tpu.core_type<tc>, window_params = [{transform_indices = @transform_0, window_bounds = array<i64: 32, 64>}, {transform_indices = @transform_1, window_bounds = array<i64: 64, 32>}, {transform_indices = @transform_2, window_bounds = array<i64: 1, 32>}, {transform_indices = @transform_3, window_bounds = array<i64: 32, 32>}]} {
    %c0 = arith.constant 0 : index
    %c0_0 = arith.constant 0 : index
    %0 = vector.load %arg2[%c0, %c0_0] : memref<32x64xbf16, #tpu.memory_space<vmem>>, vector<32x64xbf16>
    %c0_1 = arith.constant 0 : index
    %c0_2 = arith.constant 0 : index
    %1 = vector.load %arg3[%c0_1, %c0_2] : memref<64x32xbf16, #tpu.memory_space<vmem>>, vector<64x32xbf16>
    %cst = arith.constant dense<0.000000e+00> : vector<32x32xf32>
    %2 = tpu.matmul %0, %1, %cst {dimension_numbers = #tpu.dot_dimension_numbers<[1], [0], [0], [1], [0, 0, 1, 1], [], []>} : vector<32x64xbf16>, vector<64x32xbf16>, vector<32x32xf32> -> vector<32x32xf32>
    %c0_3 = arith.constant 0 : index
    %c0_4 = arith.constant 0 : index
    %3 = vector.load %arg4[%c0_3, %c0_4] : memref<1x32xf32, #tpu.memory_space<vmem>>, vector<1x32xf32>
    %4 = vector.broadcast %3 : vector<1x32xf32> to vector<32x32xf32>
    %5 = arith.addf %2, %4 : vector<32x32xf32>
    %c0_5 = arith.constant 0 : index
    %c0_6 = arith.constant 0 : index
    %6 = vector.load %arg5[%c0_5, %c0_6] : memref<32x32xf32, #tpu.memory_space<vmem>>, vector<32x32xf32>
    tpu.vector_store %arg5[%c0_5, %c0_6], %5 {strides = array<i32>} : memref<32x32xf32, #tpu.memory_space<vmem>>, vector<32x32xf32>,
    return
  }
  func.func @transform_0(%arg0: i32, %arg1: i32) -> (i32, i32) {
    %c0_i32 = arith.constant 0 : i32
    %c0_i32_0 = arith.constant 0 : i32
    return %arg1, %c0_i32 : i32, i32
  }
  func.func @transform_1(%arg0: i32, %arg1: i32) -> (i32, i32) {
    %c0_i32 = arith.constant 0 : i32
    %c0_i32_0 = arith.constant 0 : i32
    return %c0_i32, %arg0 : i32, i32
  }
  func.func @transform_2(%arg0: i32, %arg1: i32) -> (i32, i32) {
    %c0_i32 = arith.constant 0 : i32
    %c0_i32_0 = arith.constant 0 : i32
    return %c0_i32, %arg0 : i32, i32
  }
  func.func @transform_3(%arg0: i32, %arg1: i32) -> (i32, i32) {
    %c0_i32 = arith.constant 0 : i32
    return %arg1, %arg0 : i32, i32
  }
}

</mosaic_0001>

<llo_original>
// kernel: patch_embed.1
$region0: #{patch_embed.1}
  #allocation0 [shape = 'u32[]', space=smem, size = 0x4, offset = 0x4, fixed_abs, tag = 'smem constant byte address 0x4 - core index']
  #allocation1 [shape = 'u32[144,128]{1,0:T(1,128)}', space=vmem, size = 0x12000, scoped, tag = 'internal scratch']
  %s0 = inlined_call_operand.vmem [shape: bf16[32,64], index: 0, kind: input, shape index: {}]
  %s1 = inlined_call_operand.vmem [shape: bf16[64,32], index: 1, kind: input, shape index: {}]
  %s2 = inlined_call_operand.vmem [shape: f32[1,32], index: 2, kind: input, shape index: {}]
  %s3 = inlined_call_operand.hbm [shape: f32[32,32], index: 3, kind: output, shape index: {}]
  %s4 = sld [smem:[#allocation0]]
  $region22: #{patch_embed.1} parent=0
    _
  %s6 = ssub.s32 1, %s4
  %s7 = scalar_select 0, %s6, %s4
  $region1: #{patch_embed.1} parent=0
    #allocation2 [shape = 'u8[16384]{0}', space=vmem, size = 0x4000, scoped, tag = 'output window, operand 0, single buffered']
    #allocation3 [shape = 's32[1]{0}', space=sflag, size = 0x4, scoped, tag = 'scoped memory for patch_embed.1']
    %8 = vsyncpa [#allocation3], 0
    // Predicated region
    $region2: #{patch_embed.1} parent=1 // pred_check
      _
    $region3: #{patch_embed.1} parent=1 // pred_check_branch
      %10 = sbr.rel (0) target = $region5
    $region4: #{patch_embed.1} parent=1 // pred_region
      _
    $region5: #{patch_embed.1} parent=1 // pred_fallthru
      _
    // Predicated region
    $region6: #{patch_embed.1} parent=1 // pred_check
      _
    $region7: #{patch_embed.1} parent=1 // pred_check_branch
      %12 = sbr.rel (0) target = $region9
    $region8: #{patch_embed.1} parent=1 // pred_region
      _
    $region9: #{patch_embed.1} parent=1 // pred_fallthru
      _
    // Predicated region
    $region10: #{patch_embed.1} parent=1 // pred_check
      _
    $region11: #{patch_embed.1} parent=1 // pred_check_branch
      %14 = sbr.rel (0) target = $region13
    $region12: #{patch_embed.1} parent=1 // pred_region
      _
    $region13: #{patch_embed.1} parent=1 // pred_fallthru
      _
    %v16 = vld [vmem:[%s0] sm:$0xf]
    %v17 = vld [vmem:[%s0 + $0x4] sm:$0xf]
    %v18 = vld [vmem:[%s0 + $0x8] sm:$0xf]
    %v19 = vld [vmem:[%s0 + $0xc] sm:$0xf]
    %v20 = vld [vmem:[%s1] sm:$0xf]
    %v21 = vld [vmem:[%s1 + $0x4] sm:$0xf]
    %v22 = vld [vmem:[%s1 + $0x8] sm:$0xf]
    %v23 = vld [vmem:[%s1 + $0xc] sm:$0xf]
    %v24 = vld [vmem:[%s1 + $0x10] sm:$0xf]
    %v25 = vld [vmem:[%s1 + $0x14] sm:$0xf]
    %v26 = vld [vmem:[%s1 + $0x18] sm:$0xf]
    %v27 = vld [vmem:[%s1 + $0x1c] sm:$0xf]
    %v28 = vld [vmem:[%s2] sm:$0x1]
    %v30 = vlaneseq
    %v31 = vshrl.u32 %v30, 7
    %v32 = vsub.s32 0, %v31
    %v33 = vrot.slane %v28, %v32
    %v39 = vunpack.c.l.b16 %v16
    %v40 = vunpack.c.l.b16 %v17
    %v41 = vunpack.c.l.b16 %v18
    %v42 = vunpack.c.l.b16 %v19
    %v43 = vpack.c.b16 %v40, %v39
    %v44 = vpack.c.b16 %v42, %v41
    %v53 = vunpack.c.l.b16 %v20
    %v54 = vunpack.c.l.b16 %v21
    %v55 = vunpack.c.l.b16 %v22
    %v56 = vunpack.c.l.b16 %v23
    %v57 = vunpack.c.l.b16 %v24
    %v58 = vunpack.c.l.b16 %v25
    %v59 = vunpack.c.l.b16 %v26
    %v60 = vunpack.c.l.b16 %v27
    %v61 = vpack.c.b16 %v54, %v53
    %v62 = vpack.c.b16 %v56, %v55
    %v63 = vpack.c.b16 %v58, %v57
    %v64 = vpack.c.b16 %v60, %v59
    %vm69 = vcmask 523264
    %v71 = vsel %vm69, %v43, 0
    %v74 = vsel %vm69, %v44, 0
    %76 = vmatprep.subr.bf16.mxu0 0
    %77 = vmatpush1.bf16.msra.mxu0 %v61
    %78 = vmatprep.subr.bf16.mxu0 0
    %79 = vmatpush1.bf16.msra.mxu0 %v62
    %80 = vmatprep.subr.bf16.mxu0 0
    %81 = vmatpush1.bf16.msra.mxu0 %v63
    %82 = vmatprep.subr.bf16.mxu0 0
    %83 = vmatpush1.bf16.msra.mxu0 %v64
    %84 = vmatprep.subr.bf16.mxu0 0
    %85 = vmatpush1.bf16.msra.mxu0 0
    %86 = vmatprep.subr.bf16.mxu0 0
    %87 = vmatpush1.bf16.msra.mxu0 0
    %88 = vmatprep.subr.bf16.mxu0 0
    %89 = vmatpush1.bf16.msra.mxu0 0
    %90 = vmatprep.subr.bf16.mxu0 0
    %91 = vmatpush1.bf16.msra.mxu0 0
    %92 = vmatprep.subr.bf16.mxu0 0
    %93 = vmatpush1.bf16.msra.mxu0 0
    %94 = vmatprep.subr.bf16.mxu0 0
    %95 = vmatpush1.bf16.msra.mxu0 0
    %96 = vmatprep.subr.bf16.mxu0 0
    %97 = vmatpush1.bf16.msra.mxu0 0
    %98 = vmatprep.subr.bf16.mxu0 0
    %99 = vmatpush1.bf16.msra.mxu0 0
    %100 = vmatprep.subr.bf16.mxu0 0
    %101 = vmatpush1.bf16.msra.mxu0 0
    %102 = vmatprep.subr.bf16.mxu0 0
    %103 = vmatpush1.bf16.msra.mxu0 0
    %104 = vmatprep.subr.bf16.mxu0 0
    %105 = vmatpush1.bf16.msra.mxu0 0
    %106 = vmatprep.subr.bf16.mxu0 0
    %107 = vmatpush1.bf16.msra.mxu0 0
    %108 = vmatprep.mubr.bf16.mxu0 0
    %109 = vmatmul.mubr.bf16.gmra.mrb[0].mxu0 %v71
    %v110 = vpop.f32.mrb[0].mxu0
    %v111 = vadd.f32 %v33, %v110
    %v112 = vpop.f32.mrb[0].mxu0
    %v113 = vpop.f32.mrb[0].mxu0
    %v114 = vadd.f32 %v33, %v113
    %v115 = vpop.f32.mrb[0].mxu0
    %116 = vmatprep.mubr.bf16.mxu0 0
    %117 = vmatmul.mubr.bf16.gmra.mrb[0].mxu0 %v74
    %v118 = vpop.f32.mrb[0].mxu0
    %v119 = vadd.f32 %v33, %v118
    %v120 = vpop.f32.mrb[0].mxu0
    %v121 = vpop.f32.mrb[0].mxu0
    %v122 = vadd.f32 %v33, %v121
    %v123 = vpop.f32.mrb[0].mxu0
    %124 = vdwg.mxu0
    %vm125 = vcmask 261120
    %126 = vst.msk [vmem:[#allocation2] sm:$0xff] %vm125, %v111
    %127 = vst.msk [vmem:[#allocation2 + $0x8] sm:$0xff] %vm125, %v114
    %128 = vst.msk [vmem:[#allocation2 + $0x10] sm:$0xff] %vm125, %v119
    %129 = vst.msk [vmem:[#allocation2 + $0x18] sm:$0xff] %vm125, %v122
    // Predicated region
    $region14: #{patch_embed.1} parent=1 // pred_check
      _
    $region15: #{patch_embed.1} parent=1 // pred_check_branch
      %131 = sbr.rel (0) target = $region17
    $region16: #{patch_embed.1} parent=1 // pred_region
      %s133 = ssub.s32 512, 512
      %134 = vsyncadd [#allocation3], %s133
      %s135 = sshll.u32 [#allocation2], 4
      %s136 = int_to_ptr.vmem [resolvable:$true] %s135
      %141 = dma.vmem_to_hbm [thread:$0]  %s136, 512, %s3, [#allocation3], 128, 128, 8
    $region17: #{patch_embed.1} parent=1 // pred_fallthru
      _
    // Predicated region
    $region18: #{patch_embed.1} parent=1 // pred_check
      _
    $region19: #{patch_embed.1} parent=1 // pred_check_branch
      %143 = sbr.rel (0) target = $region21
    $region20: #{patch_embed.1} parent=1 // pred_region
      %144 = dma.done [#allocation3], 512
    $region21: #{patch_embed.1} parent=1 // pred_fallthru
      _
    %145 = vsyncpa [#allocation3], 1

</llo_original>
